<compile_context>
chip_gen: v7x
topology: tpu7x:2x2x1
jax: 0.10.0
libtpu: 0.0.40
codegen_flags: <defaults>
</compile_context>

<pallas_src>
import functools

import jax
import jax.numpy as jnp
from jax import lax
from jax.experimental import pallas as pl
from jax.experimental.pallas import tpu as pltpu


def _round_up(x, m):
    return ((x + m - 1) // m) * m


def bert_output_kernel(x_ref, w_ref, b_ref, res_ref, gamma_ref, beta_ref,
                       o_ref, *, eps, inv_n):
    # x_ref:    (TM, K)  hidden_states tile (native dtype -> straight to MXU)
    # w_ref:    (N,  K)  dense weight, torch layout (resident, constant index map)
    # b_ref:    (1,  N)  dense bias
    # res_ref:  (TM, N)  residual (input_tensor) tile
    # gamma/beta: (1, N) LayerNorm affine params
    x = x_ref[...]
    w = w_ref[...]

    # Dense: y = x @ W^T  — contract K on both operands, f32 accumulate on MXU.
    y = lax.dot_general(x, w, (((1,), (1,)), ((), ())),
                        preferred_element_type=jnp.float32)

    bias = b_ref[...].astype(jnp.float32)
    gamma = gamma_ref[...].astype(jnp.float32)
    beta = beta_ref[...].astype(jnp.float32)

    # dropout -> identity (eval), then residual add (f32 epilogue).
    h = y + bias + res_ref[...].astype(jnp.float32)

    # LayerNorm over the hidden dim: fused single-pass sum / sum-of-squares,
    # biased variance (matches torch.nn.LayerNorm).
    s = jnp.sum(h, axis=-1, keepdims=True)
    ss = jnp.sum(h * h, axis=-1, keepdims=True)
    mean = s * inv_n
    var = jnp.maximum(ss * inv_n - mean * mean, 0.0)
    inv = lax.rsqrt(var + eps)                       # EUP
    o_ref[...] = ((h - mean) * inv * gamma + beta).astype(o_ref.dtype)


def _vmem_bytes(tm, K, N, act_bytes, w_bytes):
    # Double-buffered activation tiles (x, residual, out) + params (counted
    # twice, conservatively) + f32 epilogue headroom.
    act = 2 * tm * (K + 2 * N) * act_bytes
    params = 2 * (N * K * w_bytes + 3 * N * 4)
    f32_tmp = 2 * tm * N * 4
    return act + params + f32_tmp


def bert_output(hidden_states, input_tensor, weight, bias, gamma, beta,
                *, eps=1e-12, tm=None):
    """hidden_states: [B,S,K], input_tensor: [B,S,N], weight: [N,K] (torch layout)."""
    B, S, K = hidden_states.shape
    N = input_tensor.shape[-1]
    M = B * S

    act_bytes = jnp.dtype(hidden_states.dtype).itemsize
    w_bytes = jnp.dtype(weight.dtype).itemsize
    row_mult = 16 if act_bytes == 2 else 8   # sublane packing: bf16 needs 16 rows

    if tm is None:
        # Largest MXU-friendly row tile that fits a conservative VMEM budget
        # (48 MiB leaves headroom even on v7x's 64 MiB per-TC VMEM).
        tm = min(512, _round_up(M, row_mult))
        budget = 48 << 20
        while tm > row_mult and _vmem_bytes(tm, K, N, act_bytes, w_bytes) > budget:
            tm = max(row_mult, _round_up(tm // 2, row_mult))

    M_pad = _round_up(M, tm)

    x2d = hidden_states.reshape(M, K)
    r2d = input_tensor.reshape(M, N)
    if M_pad != M:
        pad = M_pad - M
        x2d = jnp.pad(x2d, ((0, pad), (0, 0)))
        r2d = jnp.pad(r2d, ((0, pad), (0, 0)))

    b2d = bias.reshape(1, N)
    g2d = gamma.reshape(1, N)
    be2d = beta.reshape(1, N)

    kernel = functools.partial(bert_output_kernel, eps=float(eps),
                               inv_n=1.0 / float(N))

    vmem_limit = int(min(max(_vmem_bytes(tm, K, N, act_bytes, w_bytes) * 3 // 2,
                             32 << 20), 64 << 20))

    out2d = pl.pallas_call(
        kernel,
        out_shape=jax.ShapeDtypeStruct((M_pad, N), hidden_states.dtype),
        grid_spec=pltpu.PrefetchScalarGridSpec(
            num_scalar_prefetch=0,
            grid=(M_pad // tm,),
            in_specs=[
                pl.BlockSpec((tm, K), lambda i: (i, 0)),   # hidden_states tile
                pl.BlockSpec((N, K), lambda i: (0, 0)),    # weight [N,K], resident
                pl.BlockSpec((1, N), lambda i: (0, 0)),    # bias
                pl.BlockSpec((tm, N), lambda i: (i, 0)),   # residual tile
                pl.BlockSpec((1, N), lambda i: (0, 0)),    # gamma
                pl.BlockSpec((1, N), lambda i: (0, 0)),    # beta
            ],
            out_specs=pl.BlockSpec((tm, N), lambda i: (i, 0)),
        ),
        compiler_params=pltpu.CompilerParams(
            dimension_semantics=("parallel",),
            vmem_limit_bytes=vmem_limit),
    )(x2d, weight, b2d, r2d, g2d, be2d)

    return out2d[:M].reshape(B, S, N)


def reference(hidden_states, input_tensor, weight, bias, gamma, beta, eps=1e-12):
    y = jnp.einsum("bsk,nk->bsn", hidden_states, weight) + bias
    h = y + input_tensor
    mean = jnp.mean(h, axis=-1, keepdims=True)
    var = jnp.mean((h - mean) ** 2, axis=-1, keepdims=True)
    return (h - mean) / jnp.sqrt(var + eps) * gamma + beta


if __name__ == "__main__":
    # Small, lane-dense config: intermediate_size=256, hidden_size=128, batch=2, seq=8
    B, S = 2, 8
    K = 256   # intermediate_size
    N = 128   # hidden_size
    eps = 1e-12

    key = jax.random.PRNGKey(0)
    k1, k2, k3, k4 = jax.random.split(key, 4)

    hidden_states = jax.random.normal(k1, (B, S, K), dtype=jnp.float32)
    input_tensor = jax.random.normal(k2, (B, S, N), dtype=jnp.float32)

    # Deterministic parameter init (nn.Linear-like scale), torch layout [N, K].
    weight = jax.random.normal(k3, (N, K), dtype=jnp.float32) * (1.0 / K) ** 0.5
    bias = jax.random.normal(k4, (N,), dtype=jnp.float32) * 0.01
    gamma = jnp.ones((N,), dtype=jnp.float32)
    beta = jnp.zeros((N,), dtype=jnp.float32)

    out = bert_output(hidden_states, input_tensor, weight, bias, gamma, beta,
                      eps=eps)
    out = jax.block_until_ready(out)

    ref = reference(hidden_states, input_tensor, weight, bias, gamma, beta, eps)
    assert out.shape == (B, S, N)
    max_err = float(jnp.max(jnp.abs(out - ref)))
    assert jnp.allclose(out, ref, atol=1e-4, rtol=1e-4), max_err

    print("KERNEL_OK")
</pallas_src>

<mosaic_0001>
module attributes {stable_mosaic.version = 11 : i64} {
  func.func @bert_output_kernel(%arg0: i32, %arg1: memref<16x256xf32, #tpu.memory_space<vmem>>, %arg2: memref<128x256xf32, #tpu.memory_space<vmem>>, %arg3: memref<1x128xf32, #tpu.memory_space<vmem>>, %arg4: memref<16x128xf32, #tpu.memory_space<vmem>>, %arg5: memref<1x128xf32, #tpu.memory_space<vmem>>, %arg6: memref<1x128xf32, #tpu.memory_space<vmem>>, %arg7: memref<16x128xf32, #tpu.memory_space<vmem>>) attributes {dimension_semantics = [#tpu.dimension_semantics<parallel>], iteration_bounds = array<i64: 1>, scalar_prefetch = 0 : i64, scratch_operands = 0 : i64, tpu.core_type = #tpu.core_type<tc>, window_params = [{transform_indices = @transform_0, window_bounds = array<i64: 16, 256>}, {pipeline_mode = #tpu.pipeline_mode<synchronous>, transform_indices = @transform_1, window_bounds = array<i64: 128, 256>}, {pipeline_mode = #tpu.pipeline_mode<synchronous>, transform_indices = @transform_2, window_bounds = array<i64: 1, 128>}, {transform_indices = @transform_3, window_bounds = array<i64: 16, 128>}, {pipeline_mode = #tpu.pipeline_mode<synchronous>, transform_indices = @transform_4, window_bounds = array<i64: 1, 128>}, {pipeline_mode = #tpu.pipeline_mode<synchronous>, transform_indices = @transform_5, window_bounds = array<i64: 1, 128>}, {transform_indices = @transform_6, window_bounds = array<i64: 16, 128>}]} {
    %c0 = arith.constant 0 : index
    %c0_0 = arith.constant 0 : index
    %0 = vector.load %arg1[%c0, %c0_0] : memref<16x256xf32, #tpu.memory_space<vmem>>, vector<16x256xf32>
    %c0_1 = arith.constant 0 : index
    %c0_2 = arith.constant 0 : index
    %1 = vector.load %arg2[%c0_1, %c0_2] : memref<128x256xf32, #tpu.memory_space<vmem>>, vector<128x256xf32>
    %cst = arith.constant dense<0.000000e+00> : vector<16x128xf32>
    %2 = tpu.matmul %0, %1, %cst {dimension_numbers = #tpu.dot_dimension_numbers<[1], [1], [0], [0], [0, 0, 1, 0], [], []>} : vector<16x256xf32>, vector<128x256xf32>, vector<16x128xf32> -> vector<16x128xf32>
    %c0_3 = arith.constant 0 : index
    %c0_4 = arith.constant 0 : index
    %3 = vector.load %arg3[%c0_3, %c0_4] : memref<1x128xf32, #tpu.memory_space<vmem>>, vector<1x128xf32>
    %c0_5 = arith.constant 0 : index
    %c0_6 = arith.constant 0 : index
    %4 = vector.load %arg5[%c0_5, %c0_6] : memref<1x128xf32, #tpu.memory_space<vmem>>, vector<1x128xf32>
    %c0_7 = arith.constant 0 : index
    %c0_8 = arith.constant 0 : index
    %5 = vector.load %arg6[%c0_7, %c0_8] : memref<1x128xf32, #tpu.memory_space<vmem>>, vector<1x128xf32>
    %6 = vector.broadcast %3 : vector<1x128xf32> to vector<16x128xf32>
    %7 = arith.addf %2, %6 : vector<16x128xf32>
    %c0_9 = arith.constant 0 : index
    %c0_10 = arith.constant 0 : index
    %8 = vector.load %arg4[%c0_9, %c0_10] : memref<16x128xf32, #tpu.memory_space<vmem>>, vector<16x128xf32>
    %9 = arith.addf %7, %8 : vector<16x128xf32>
    %cst_11 = arith.constant dense<0.000000e+00> : vector<16xf32>
    %10 = vector.multi_reduction <add>, %9, %cst_11 [1] : vector<16x128xf32> to vector<16xf32>
    %11 = vector.shape_cast %10 : vector<16xf32> to vector<16x1xf32>
    %12 = arith.mulf %9, %9 : vector<16x128xf32>
    %cst_12 = arith.constant dense<0.000000e+00> : vector<16xf32>
    %13 = vector.multi_reduction <add>, %12, %cst_12 [1] : vector<16x128xf32> to vector<16xf32>
    %14 = vector.shape_cast %13 : vector<16xf32> to vector<16x1xf32>
    %cst_13 = arith.constant 7.812500e-03 : f32
    %15 = vector.broadcast %cst_13 : f32 to vector<16x1xf32>
    %16 = arith.mulf %11, %15 : vector<16x1xf32>
    %cst_14 = arith.constant 7.812500e-03 : f32
    %17 = vector.broadcast %cst_14 : f32 to vector<16x1xf32>
    %18 = arith.mulf %14, %17 : vector<16x1xf32>
    %19 = arith.mulf %16, %16 : vector<16x1xf32>
    %20 = arith.subf %18, %19 : vector<16x1xf32>
    %cst_15 = arith.constant 0.000000e+00 : f32
    %21 = vector.broadcast %cst_15 : f32 to vector<16x1xf32>
    %22 = arith.maximumf %20, %21 : vector<16x1xf32>
    %cst_16 = arith.constant 9.99999996E-13 : f32
    %23 = vector.broadcast %cst_16 : f32 to vector<16x1xf32>
    %24 = arith.addf %22, %23 : vector<16x1xf32>
    %25 = math.rsqrt %24 : vector<16x1xf32>
    %26 = vector.broadcast %16 : vector<16x1xf32> to vector<16x128xf32>
    %27 = arith.subf %9, %26 : vector<16x128xf32>
    %28 = vector.broadcast %25 : vector<16x1xf32> to vector<16x128xf32>
    %29 = arith.mulf %27, %28 : vector<16x128xf32>
    %30 = vector.broadcast %4 : vector<1x128xf32> to vector<16x128xf32>
    %31 = arith.mulf %29, %30 : vector<16x128xf32>
    %32 = vector.broadcast %5 : vector<1x128xf32> to vector<16x128xf32>
    %33 = arith.addf %31, %32 : vector<16x128xf32>
    %c0_17 = arith.constant 0 : index
    %c0_18 = arith.constant 0 : index
    %34 = vector.load %arg7[%c0_17, %c0_18] : memref<16x128xf32, #tpu.memory_space<vmem>>, vector<16x128xf32>
    tpu.vector_store %arg7[%c0_17, %c0_18], %33 {strides = array<i32>} : memref<16x128xf32, #tpu.memory_space<vmem>>, vector<16x128xf32>,
    return
  }
  func.func @transform_0(%arg0: i32) -> (i32, i32) {
    %c0_i32 = arith.constant 0 : i32
    %c0_i32_0 = arith.constant 0 : i32
    return %arg0, %c0_i32 : i32, i32
  }
  func.func @transform_1(%arg0: i32) -> (i32, i32) {
    %c0_i32 = arith.constant 0 : i32
    %c0_i32_0 = arith.constant 0 : i32
    %c0_i32_1 = arith.constant 0 : i32
    return %c0_i32, %c0_i32_0 : i32, i32
  }
  func.func @transform_2(%arg0: i32) -> (i32, i32) {
    %c0_i32 = arith.constant 0 : i32
    %c0_i32_0 = arith.constant 0 : i32
    %c0_i32_1 = arith.constant 0 : i32
    return %c0_i32, %c0_i32_0 : i32, i32
  }
  func.func @transform_3(%arg0: i32) -> (i32, i32) {
    %c0_i32 = arith.constant 0 : i32
    %c0_i32_0 = arith.constant 0 : i32
    return %arg0, %c0_i32 : i32, i32
  }
  func.func @transform_4(%arg0: i32) -> (i32, i32) {
    %c0_i32 = arith.constant 0 : i32
    %c0_i32_0 = arith.constant 0 : i32
    %c0_i32_1 = arith.constant 0 : i32
    return %c0_i32, %c0_i32_0 : i32, i32
  }
  func.func @transform_5(%arg0: i32) -> (i32, i32) {
    %c0_i32 = arith.constant 0 : i32
    %c0_i32_0 = arith.constant 0 : i32
    %c0_i32_1 = arith.constant 0 : i32
    return %c0_i32, %c0_i32_0 : i32, i32
  }
  func.func @transform_6(%arg0: i32) -> (i32, i32) {
    %c0_i32 = arith.constant 0 : i32
    %c0_i32_0 = arith.constant 0 : i32
    return %arg0, %c0_i32 : i32, i32
  }
}

</mosaic_0001>

<llo_original>
// kernel: tpu_custom_call.1
$region0: #{tpu_custom_call.1}
  #allocation0 [shape = 'u32[]', space=smem, size = 0x4, offset = 0x4, fixed_abs, tag = 'smem constant byte address 0x4 - core index']
  #allocation1 [shape = 'u32[144,128]{1,0:T(1,128)}', space=vmem, size = 0x12000, scoped, tag = 'internal scratch']
  %s0 = inlined_call_operand.hbm [shape: f32[16,256], index: 0, kind: input, shape index: {}]
  %s1 = inlined_call_operand.hbm [shape: f32[128,256], index: 1, kind: input, shape index: {}]
  %s2 = inlined_call_operand.vmem [shape: f32[1,128], index: 2, kind: input, shape index: {}]
  %s3 = inlined_call_operand.hbm [shape: f32[16,128], index: 3, kind: input, shape index: {}]
  %s4 = inlined_call_operand.vmem [shape: f32[1,128], index: 4, kind: input, shape index: {}]
  %s5 = inlined_call_operand.vmem [shape: f32[1,128], index: 5, kind: input, shape index: {}]
  %s6 = inlined_call_operand.hbm [shape: f32[16,128], index: 6, kind: output, shape index: {}]
  %s7 = sld [smem:[#allocation0]]
  $region46: #{tpu_custom_call.1} parent=0
    _
  %s9 = ssub.s32 1, %s7
  %s10 = scalar_select 0, %s9, %s7
  $region1: #{tpu_custom_call.1} parent=0
    #allocation2 [shape = 'u8[16384]{0}', space=vmem, size = 0x4000, scoped, tag = 'input window, operand 0, single buffered']
    #allocation3 [shape = 's32[1]{0}', space=sflag, size = 0x4, scoped, tag = 'scoped memory for tpu_custom_call.1']
    #allocation4 [shape = 's32[1]{0}', space=sflag, size = 0x4, scoped, tag = 'scoped memory for tpu_custom_call.1']
    #allocation5 [shape = 'u8[131072]{0}', space=vmem, size = 0x20000, scoped, tag = 'input window, operand 1, single buffered']
    #allocation6 [shape = 's32[1]{0}', space=sflag, size = 0x4, scoped, tag = 'scoped memory for tpu_custom_call.1']
    #allocation7 [shape = 'u8[8192]{0}', space=vmem, size = 0x2000, scoped, tag = 'input window, operand 3, single buffered']
    #allocation8 [shape = 'u8[8192]{0}', space=vmem, size = 0x2000, scoped, tag = 'output window, operand 0, single buffered']
    %11 = vsyncpa [#allocation3], 0
    %12 = vsyncpa [#allocation6], 0
    %13 = vsyncpa [#allocation4], 0
    // Predicated region
    $region2: #{tpu_custom_call.1} parent=1 // pred_check
      _
    $region3: #{tpu_custom_call.1} parent=1 // pred_check_branch
      %15 = sbr.rel (0) target = $region5
    $region4: #{tpu_custom_call.1} parent=1 // pred_region
      %s17 = ssub.s32 512, 512
      %18 = vsyncadd [#allocation3], %s17
      %s19 = sshll.u32 [#allocation2], 4
      %s20 = int_to_ptr.vmem [resolvable:$true] %s19
      %25 = dma.hbm_to_vmem [thread:$0]  %s0, 512, %s20, [#allocation3], 256, 256, 16
    $region5: #{tpu_custom_call.1} parent=1 // pred_fallthru
      _
    // Predicated region
    $region6: #{tpu_custom_call.1} parent=1 // pred_check
      _
    $region7: #{tpu_custom_call.1} parent=1 // pred_check_branch
      %27 = sbr.rel (0) target = $region9
    $region8: #{tpu_custom_call.1} parent=1 // pred_region
      %s29 = ssub.s32 4096, 4096
      %30 = vsyncadd [#allocation6], %s29
      %s31 = sshll.u32 [#allocation5], 4
      %s32 = int_to_ptr.vmem [resolvable:$true] %s31
      %37 = dma.hbm_to_vmem [thread:$0]  %s1, 4096, %s32, [#allocation6], 256, 256, 16
    $region9: #{tpu_custom_call.1} parent=1 // pred_fallthru
      _
    // Predicated region
    $region10: #{tpu_custom_call.1} parent=1 // pred_check
      _
    $region11: #{tpu_custom_call.1} parent=1 // pred_check_branch
      %39 = sbr.rel (0) target = $region13
    $region12: #{tpu_custom_call.1} parent=1 // pred_region
      _
    $region13: #{tpu_custom_call.1} parent=1 // pred_fallthru
      _
    // Predicated region
    $region14: #{tpu_custom_call.1} parent=1 // pred_check
      _
    $region15: #{tpu_custom_call.1} parent=1 // pred_check_branch
      %41 = sbr.rel (0) target = $region17
    $region16: #{tpu_custom_call.1} parent=1 // pred_region
      %s43 = ssub.s32 256, 256
      %44 = vsyncadd [#allocation6], %s43
      %s45 = sshll.u32 [#allocation7], 4
      %s46 = int_to_ptr.vmem [resolvable:$true] %s45
      %51 = dma.hbm_to_vmem [thread:$0]  %s3, 256, %s46, [#allocation6], 128, 128, 8
    $region17: #{tpu_custom_call.1} parent=1 // pred_fallthru
      _
    // Predicated region
    $region18: #{tpu_custom_call.1} parent=1 // pred_check
      _
    $region19: #{tpu_custom_call.1} parent=1 // pred_check_branch
      %53 = sbr.rel (0) target = $region21
    $region20: #{tpu_custom_call.1} parent=1 // pred_region
      _
    $region21: #{tpu_custom_call.1} parent=1 // pred_fallthru
      _
    // Predicated region
    $region22: #{tpu_custom_call.1} parent=1 // pred_check
      _
    $region23: #{tpu_custom_call.1} parent=1 // pred_check_branch
      %55 = sbr.rel (0) target = $region25
    $region24: #{tpu_custom_call.1} parent=1 // pred_region
      _
    $region25: #{tpu_custom_call.1} parent=1 // pred_fallthru
      _
    // Predicated region
    $region26: #{tpu_custom_call.1} parent=1 // pred_check
      _
    $region27: #{tpu_custom_call.1} parent=1 // pred_check_branch
      %57 = sbr.rel (0) target = $region29
    $region28: #{tpu_custom_call.1} parent=1 // pred_region
      %58 = dma.done [#allocation3], 512
    $region29: #{tpu_custom_call.1} parent=1 // pred_fallthru
      _
    // Predicated region
    $region30: #{tpu_custom_call.1} parent=1 // pred_check
      _
    $region31: #{tpu_custom_call.1} parent=1 // pred_check_branch
      %60 = sbr.rel (0) target = $region33
    $region32: #{tpu_custom_call.1} parent=1 // pred_region
      %61 = dma.done [#allocation6], 4096
    $region33: #{tpu_custom_call.1} parent=1 // pred_fallthru
      _
    // Predicated region
    $region34: #{tpu_custom_call.1} parent=1 // pred_check
      _
    $region35: #{tpu_custom_call.1} parent=1 // pred_check_branch
      %63 = sbr.rel (0) target = $region37
    $region36: #{tpu_custom_call.1} parent=1 // pred_region
      %64 = dma.done [#allocation6], 256
    $region37: #{tpu_custom_call.1} parent=1 // pred_fallthru
      _
    %v65 = vld [vmem:[#allocation2] sm:$0xff]
    %v66 = vld [vmem:[#allocation2 + $0x8] sm:$0xff]
    %v67 = vld [vmem:[#allocation2 + $0x10] sm:$0xff]
    %v68 = vld [vmem:[#allocation2 + $0x18] sm:$0xff]
    %v69 = vld [vmem:[#allocation5] sm:$0xff]
    %v70 = vld [vmem:[#allocation5 + $0x8] sm:$0xff]
    %v71 = vld [vmem:[#allocation5 + $0x10] sm:$0xff]
    %v72 = vld [vmem:[#allocation5 + $0x18] sm:$0xff]
    %v73 = vld [vmem:[#allocation5 + $0x20] sm:$0xff]
    %v74 = vld [vmem:[#allocation5 + $0x28] sm:$0xff]
    %v75 = vld [vmem:[#allocation5 + $0x30] sm:$0xff]
    %v76 = vld [vmem:[#allocation5 + $0x38] sm:$0xff]
    %v77 = vld [vmem:[#allocation5 + $0x40] sm:$0xff]
    %v78 = vld [vmem:[#allocation5 + $0x48] sm:$0xff]
    %v79 = vld [vmem:[#allocation5 + $0x50] sm:$0xff]
    %v80 = vld [vmem:[#allocation5 + $0x58] sm:$0xff]
    %v81 = vld [vmem:[#allocation5 + $0x60] sm:$0xff]
    %v82 = vld [vmem:[#allocation5 + $0x68] sm:$0xff]
    %v83 = vld [vmem:[#allocation5 + $0x70] sm:$0xff]
    %v84 = vld [vmem:[#allocation5 + $0x78] sm:$0xff]
    %v85 = vld [vmem:[#allocation5 + $0x80] sm:$0xff]
    %v86 = vld [vmem:[#allocation5 + $0x88] sm:$0xff]
    %v87 = vld [vmem:[#allocation5 + $0x90] sm:$0xff]
    %v88 = vld [vmem:[#allocation5 + $0x98] sm:$0xff]
    %v89 = vld [vmem:[#allocation5 + $0xa0] sm:$0xff]
    %v90 = vld [vmem:[#allocation5 + $0xa8] sm:$0xff]
    %v91 = vld [vmem:[#allocation5 + $0xb0] sm:$0xff]
    %v92 = vld [vmem:[#allocation5 + $0xb8] sm:$0xff]
    %v93 = vld [vmem:[#allocation5 + $0xc0] sm:$0xff]
    %v94 = vld [vmem:[#allocation5 + $0xc8] sm:$0xff]
    %v95 = vld [vmem:[#allocation5 + $0xd0] sm:$0xff]
    %v96 = vld [vmem:[#allocation5 + $0xd8] sm:$0xff]
    %v97 = vld [vmem:[#allocation5 + $0xe0] sm:$0xff]
    %v98 = vld [vmem:[#allocation5 + $0xe8] sm:$0xff]
    %v99 = vld [vmem:[#allocation5 + $0xf0] sm:$0xff]
    %v100 = vld [vmem:[#allocation5 + $0xf8] sm:$0xff]
    %v101 = vld [vmem:[%s2] sm:$0x1]
    %v102 = vld [vmem:[%s4] sm:$0x1]
    %v103 = vld [vmem:[%s5] sm:$0x1]
    %v105 = vlaneseq
    %v106 = vshrl.u32 %v105, 7
    %v107 = vsub.s32 0, %v106
    %v108 = vrot.slane %v101, %v107
    %110 = vmatprep.subr.mxu0 %v70
    %111 = vmatpush1.xpose.msra.mxu0 %v69
    %112 = vmatprep.subr.mxu0 %v72
    %113 = vmatpush1.xpose.msra.mxu0 %v71
    %114 = vmatprep.subr.mxu0 %v74
    %115 = vmatpush1.xpose.msra.mxu0 %v73
    %116 = vmatprep.subr.mxu0 %v76
    %117 = vmatpush1.xpose.msra.mxu0 %v75
    %118 = vmatprep.subr.mxu0 %v78
    %119 = vmatpush1.xpose.msra.mxu0 %v77
    %120 = vmatprep.subr.mxu0 %v80
    %121 = vmatpush1.xpose.msra.mxu0 %v79
    %122 = vmatprep.subr.mxu0 %v82
    %123 = vmatpush1.xpose.msra.mxu0 %v81
    %124 = vmatprep.subr.mxu0 %v84
    %125 = vmatpush1.xpose.msra.mxu0 %v83
    %126 = vmatprep.subr.mxu0 %v86
    %127 = vmatpush1.xpose.msra.mxu0 %v85
    %128 = vmatprep.subr.mxu0 %v88
    %129 = vmatpush1.xpose.msra.mxu0 %v87
    %130 = vmatprep.subr.mxu0 %v90
    %131 = vmatpush1.xpose.msra.mxu0 %v89
    %132 = vmatprep.subr.mxu0 %v92
    %133 = vmatpush1.xpose.msra.mxu0 %v91
    %134 = vmatprep.subr.mxu0 %v94
    %135 = vmatpush1.xpose.msra.mxu0 %v93
    %136 = vmatprep.subr.mxu0 %v96
    %137 = vmatpush1.xpose.msra.mxu0 %v95
    %138 = vmatprep.subr.mxu0 %v98
    %139 = vmatpush1.xpose.msra.mxu0 %v97
    %140 = vmatprep.subr.mxu0 %v100
    %141 = vmatpush1.xpose.msra.mxu0 %v99
    %142 = vmatprep.subr.mxu0 0.0
    %143 = vmatpush1.xpose.msra.mxu0 0.0
    %144 = vmatprep.subr.mxu0 0.0
    %145 = vmatpush1.xpose.msra.mxu0 0.0
    %146 = vmatprep.subr.mxu0 0.0
    %147 = vmatpush1.xpose.msra.mxu0 0.0
    %148 = vmatprep.subr.mxu0 0.0
    %149 = vmatpush1.xpose.msra.mxu0 0.0
    %150 = vmatprep.subr.mxu0 0.0
    %151 = vmatpush1.xpose.msra.mxu0 0.0
    %152 = vmatprep.subr.mxu0 0.0
    %153 = vmatpush1.xpose.msra.mxu0 0.0
    %154 = vmatprep.subr.mxu0 0.0
    %155 = vmatpush1.xpose.msra.mxu0 0.0
    %156 = vmatprep.subr.mxu0 0.0
    %157 = vmatpush1.xpose.msra.mxu0 0.0
    %158 = vmatprep.subr.mxu0 0.0
    %159 = vmatpush1.xpose.msra.mxu0 0.0
    %160 = vmatprep.subr.mxu0 0.0
    %161 = vmatpush1.xpose.msra.mxu0 0.0
    %162 = vmatprep.subr.mxu0 0.0
    %163 = vmatpush1.xpose.msra.mxu0 0.0
    %164 = vmatprep.subr.mxu0 0.0
    %165 = vmatpush1.xpose.msra.mxu0 0.0
    %166 = vmatprep.subr.mxu0 0.0
    %167 = vmatpush1.xpose.msra.mxu0 0.0
    %168 = vmatprep.subr.mxu0 0.0
    %169 = vmatpush1.xpose.msra.mxu0 0.0
    %170 = vmatprep.subr.mxu0 0.0
    %171 = vmatpush1.xpose.msra.mxu0 0.0
    %172 = vmatprep.subr.mxu0 0.0
    %173 = vmatpush1.xpose.msra.mxu0 0.0
    %174 = vmatprep.mubr.f32.mxu0 %v66
    %175 = vmatmul.mubr.f32.gmra.mrb[0].mxu0 %v65
    %v176 = vpop.f32.mrb[0].mxu0
    %v177 = vadd.f32 %v108, %v176
    %v178 = vpop.f32.mrb[0].mxu0
    %179 = vmatprep.mubr.f32.mxu0 %v68
    %180 = vmatmul.mubr.f32.gmra.mrb[0].mxu0 %v67
    %v181 = vpop.f32.mrb[0].mxu0
    %v182 = vadd.f32 %v108, %v181
    %v183 = vpop.f32.mrb[0].mxu0
    %184 = vdwg.mxu0
    %v185 = vld [vmem:[#allocation7] sm:$0xff]
    %v186 = vld [vmem:[#allocation7 + $0x8] sm:$0xff]
    %v187 = vadd.f32 %v177, %v185
    %v188 = vadd.f32 %v182, %v186
    %189 = vadd.xlane.f32.xlu0 %v187
    %v190 = vpop.xlane.xlu0 %189
    %191 = vadd.xlane.f32.xlu0 %v188
    %v192 = vpop.xlane.xlu0 %191
    %v193 = vmul.f32 %v187, %v187
    %v194 = vmul.f32 %v188, %v188
    %195 = vadd.xlane.f32.xlu0 %v193
    %v196 = vpop.xlane.xlu0 %195
    %197 = vadd.xlane.f32.xlu0 %v194
    %v198 = vpop.xlane.xlu0 %197
    %v199 = vmul.f32 %v190, 0.0078125
    %v200 = vmul.f32 %v192, 0.0078125
    %v201 = vmul.f32 %v196, 0.0078125
    %v202 = vmul.f32 %v198, 0.0078125
    %v203 = vmul.f32 %v199, %v199
    %v204 = vmul.f32 %v200, %v200
    %v205 = vsub.f32 %v201, %v203
    %v206 = vsub.f32 %v202, %v204
    %v207 = vmax.f32 %v205, 0.0
    %v208 = vmax.f32 %v206, 0.0
    %v209 = vadd.f32 %v207, 1e-12
    %v210 = vadd.f32 %v208, 1e-12
    %v211 = vrsqrt.pop %v209
    %v212 = vrsqrt.pop %v210
    %v213 = vsub.f32 %v187, %v199
    %v214 = vsub.f32 %v188, %v200
    %v215 = vmul.f32 %v213, %v211
    %v216 = vmul.f32 %v214, %v212
    %v218 = vlaneseq
    %v219 = vshrl.u32 %v218, 7
    %v220 = vsub.s32 0, %v219
    %v221 = vrot.slane %v102, %v220
    %v223 = vmul.f32 %v215, %v221
    %v224 = vmul.f32 %v216, %v221
    %v226 = vlaneseq
    %v227 = vshrl.u32 %v226, 7
    %v228 = vsub.s32 0, %v227
    %v229 = vrot.slane %v103, %v228
    %v231 = vadd.f32 %v223, %v229
    %v232 = vadd.f32 %v224, %v229
    %233 = vst [vmem:[#allocation8] sm:$0xff] %v231
    %234 = vst [vmem:[#allocation8 + $0x8] sm:$0xff] %v232
    // Predicated region
    $region38: #{tpu_custom_call.1} parent=1 // pred_check
      _
    $region39: #{tpu_custom_call.1} parent=1 // pred_check_branch
      %236 = sbr.rel (0) target = $region41
    $region40: #{tpu_custom_call.1} parent=1 // pred_region
      %s238 = ssub.s32 256, 256
      %239 = vsyncadd [#allocation4], %s238
      %s240 = sshll.u32 [#allocation8], 4
      %s241 = int_to_ptr.vmem [resolvable:$true] %s240
      %246 = dma.vmem_to_hbm [thread:$0]  %s241, 256, %s6, [#allocation4], 128, 128, 8
    $region41: #{tpu_custom_call.1} parent=1 // pred_fallthru
      _
    // Predicated region
    $region42: #{tpu_custom_call.1} parent=1 // pred_check
      _
    $region43: #{tpu_custom_call.1} parent=1 // pred_check_branch
      %248 = sbr.rel (0) target = $region45
    $region44: #{tpu_custom_call.1} parent=1 // pred_region
      %249 = dma.done [#allocation4], 256
    $region45: #{tpu_custom_call.1} parent=1 // pred_fallthru
      _
    %250 = vsyncpa [#allocation3], 1
    %251 = vsyncpa [#allocation6], 1
    %252 = vsyncpa [#allocation4], 1

</llo_original>
